<compile_context>
chip_gen: v6e
topology: v6e:2x2x1
jax: 0.10.0
libtpu: 0.0.40
codegen_flags: <defaults>
</compile_context>

<pallas_src>
import functools

import jax
import jax.numpy as jnp
from jax.experimental import pallas as pl
from jax.experimental.pallas import tpu as pltpu


def _patch_embed_kernel(p_ref, w_ref, ce_ref, o_ref):
    # p_ref : (TILE_C, TILE_NP, Kp)  im2col'd patches for TILE_C channels
    # w_ref : (Kp, D)                projection weight (lane-padded K = P*P)
    # ce_ref: (TILE_C, 1, D)         f32 (channel embedding + conv bias) rows
    # o_ref : (TILE_C, TILE_NP, D)   output tokens
    tile_c = p_ref.shape[0]
    # One rank-2 MXU matmul per packed channel (static unrolled loop).  This
    # avoids the layout-breaking (C, Np)->M collapse, so channel packing works
    # for any Np (196, 256, ...).  Each acc is stored before the next matmul,
    # keeping the live f32 accumulator to one channel's worth.
    for c in range(tile_c):
        acc = jnp.dot(p_ref[c], w_ref[...], preferred_element_type=jnp.float32)
        o_ref[c] = (acc + ce_ref[c]).astype(o_ref.dtype)


def _vmem_budget_bytes():
    """Generation-aware (per-step working-set budget, vmem_limit clamp)."""
    budget = 13 << 20   # conservative default: fits v5e's 16 MiB scoped VMEM
    clamp = 56 << 20    # never request more than this via vmem_limit_bytes
    try:
        info = pltpu.get_tpu_info()
        cap = int(info.vmem_capacity_bytes)
        clamp = min(int(cap * 0.85), 100 << 20)   # leave headroom for Mosaic/XLA
        budget = min(int(cap * 0.60), 40 << 20)
    except Exception:
        pass
    try:
        kind = jax.devices()[0].device_kind.lower()
    except Exception:
        kind = ""
    if "v7" in kind:
        budget, clamp = min(budget, 40 << 20), min(clamp, 54 << 20)  # 64 MiB/TC
    elif "v6" in kind:
        budget = min(budget, 28 << 20)            # inside the 32 MiB scoped default
    elif "v5" in kind or "v4" in kind:
        budget = min(budget, 13 << 20)            # inside the 16 MiB scoped default
    return budget, clamp


def _choose_tiles(Cin, Np, K, D, in_bytes, out_bytes, budget):
    """Pick (TILE_C, TILE_NP) giving large per-step tiles within `budget`.

    TILE_NP divides Np and is a multiple of 8 (layout rule) or equals Np.
    TILE_C > 1 (channel packing) whenever a whole channel's patches fit the
    row target -- no Np % 8 requirement (the kernel loops over channels).
    """
    def work(tc, tn):
        return (2 * tc * tn * K * in_bytes         # patch tiles, double-buffered
                + 2 * tc * tn * D * out_bytes      # output tiles, double-buffered
                + 2 * K * D * in_bytes             # weight (2 buffers, constant idx)
                + 2 * tc * D * 4                   # fused bias+chan-embed rows
                + 2 * tn * D * 4)                  # f32 acc + epilogue temp

    best = (1, Np)
    for target_m in (4096, 2048, 1024, 512, 256, 128, 64, 32, 16, 8):
        if Np <= target_m:
            tn = Np
            tc = max(1, min(Cin, target_m // Np))
            while tc > 1 and Cin % tc:
                tc -= 1
        else:
            # Tile Np with a multiple-of-8 divisor <= target; fall back to the
            # full Np when none exists (vmem_limit is raised by the caller).
            tn = Np
            t = target_m - target_m % 8
            while t >= 8:
                if Np % t == 0:
                    tn = t
                    break
                t -= 8
            tc = 1
        best = (tc, tn)
        if work(tc, tn) <= budget:
            break
    tc, tn = best
    return tc, tn, work(tc, tn)


def patch_embed_per_channel(x, proj_w, proj_b, channel_embed_w, cur_channels,
                            patch_size, *, compute_dtype=None):
    """Forward of PatchEmbedPerChannel (eval path). Returns (tokens, Cin).

    compute_dtype=None preserves x.dtype exactly; pass jnp.bfloat16 on any
    generation for ~2x less HBM traffic on this memory-bound op (epilogue and
    accumulation stay f32).
    """
    B, Cin, H, W = x.shape
    P = patch_size
    assert H % P == 0 and W % P == 0, "image size must be divisible by patch"
    Hp, Wp = H // P, W // P
    Np = Hp * Wp
    K = P * P
    D = proj_w.shape[0]

    in_dtype = jnp.dtype(compute_dtype) if compute_dtype is not None else x.dtype
    out_dtype = in_dtype

    # --- im2col glue (row-major inside each PxP patch, matching Conv3d). With
    # allow_input_fusion below XLA may fuse this transpose into the kernel's
    # input DMA instead of writing a second full copy of x to HBM. ---
    patches = x.reshape(B, Cin, Hp, P, Wp, P)
    patches = patches.transpose(0, 1, 2, 4, 3, 5).reshape(B, Cin, Np, K)
    patches = patches.astype(in_dtype)

    # Conv3d weight (D, 1, 1, P, P) -> (K, D) so conv == patches @ w2d.
    w2d = proj_w.reshape(D, K).T.astype(in_dtype)

    # Lane-pad K to a multiple of 128: HBM bytes are unchanged ((8,128) tiling
    # already pads the minor dim), but masked loads / underfilled vregs go away
    # for small-patch configs (P=4 -> K=16, P=8 -> K=64, ...).
    K_pad = -(-K // 128) * 128
    if K_pad != K:
        patches = jnp.pad(patches, ((0, 0), (0, 0), (0, 0), (0, K_pad - K)))
        w2d = jnp.pad(w2d, ((0, K_pad - K), (0, 0)))

    # Fold the conv bias into the gathered channel embedding: one f32 epilogue
    # add in-kernel, one fewer input stream / resident VMEM buffer.
    chan_idx = jnp.asarray(cur_channels, dtype=jnp.int32)
    ce_bias = (channel_embed_w[chan_idx].astype(jnp.float32)
               + proj_b.astype(jnp.float32)[None, :]).reshape(Cin, 1, D)

    in_bytes = jnp.dtype(in_dtype).itemsize
    out_bytes = jnp.dtype(out_dtype).itemsize
    budget, clamp = _vmem_budget_bytes()
    tile_c, tile_np, work = _choose_tiles(Cin, Np, K_pad, D, in_bytes,
                                          out_bytes, budget)

    grid = (B, Cin // tile_c, Np // tile_np)

    flops = 2 * B * Cin * Np * K_pad * D
    # Kernel-side HBM traffic (patches read + tokens write + weight + ce rows).
    # If the im2col producer fuses into the input DMA the patch read is the
    # read of x itself -- same byte count -- so this is valid either way.
    bytes_accessed = (B * Cin * Np * (K_pad * in_bytes + D * out_bytes)
                      + K_pad * D * in_bytes + Cin * D * 4)

    # Raise (never lower) the scoped-VMEM limit: at least the 32 MiB default,
    # at most the generation-aware clamp, covering the estimated working set
    # (which now includes the f32 accumulator) plus headroom.
    vmem_limit = int(min(clamp, max(work + (4 << 20), 32 << 20)))

    out = pl.pallas_call(
        _patch_embed_kernel,
        out_shape=jax.ShapeDtypeStruct((B, Cin, Np, D), out_dtype),
        grid_spec=pltpu.PrefetchScalarGridSpec(
            num_scalar_prefetch=0,
            grid=grid,
            in_specs=[
                # (tile_c, tile_np, K_pad) patch tile for batch b.
                pl.BlockSpec((None, tile_c, tile_np, K_pad),
                             lambda b, c, t: (b, c, t, 0)),
                # Full projection weight, constant index -> DMA'd once.
                pl.BlockSpec((K_pad, D), lambda b, c, t: (0, 0)),
                # Fused (channel embedding + bias) rows for this channel tile.
                pl.BlockSpec((tile_c, 1, D), lambda b, c, t: (c, 0, 0)),
            ],
            out_specs=pl.BlockSpec((None, tile_c, tile_np, D),
                                   lambda b, c, t: (b, c, t, 0)),
        ),
        compiler_params=pltpu.CompilerParams(
            dimension_semantics=("parallel", "parallel", "parallel"),
            # Let XLA fuse the im2col transpose/cast/pad into the patches operand.
            allow_input_fusion=[True, False, False],
            vmem_limit_bytes=vmem_limit,
        ),
        cost_estimate=pl.CostEstimate(flops=flops, transcendentals=0,
                                      bytes_accessed=bytes_accessed),
    )(patches, w2d, ce_bias)

    # flatten(2).transpose(1,2) token order == (channel-major, then spatial).
    tokens = out.reshape(B, Cin * Np, D)
    return tokens, Cin


def _reference(x, proj_w, proj_b, channel_embed_w, cur_channels, patch_size):
    """Plain-JAX reference mirroring the PyTorch forward."""
    B, Cin, H, W = x.shape
    P = patch_size
    Hp, Wp = H // P, W // P
    D = proj_w.shape[0]
    patches = x.reshape(B, Cin, Hp, P, Wp, P).transpose(0, 1, 2, 4, 3, 5)
    patches = patches.reshape(B, Cin, Hp * Wp, P * P)
    w2d = proj_w.reshape(D, P * P)
    y = jnp.einsum("bcnk,dk->bcnd", patches, w2d) + proj_b[None, None, None, :]
    ce = channel_embed_w[jnp.asarray(cur_channels)]
    y = y + ce[None, :, None, :]
    return y.reshape(B, Cin * Hp * Wp, D)


if __name__ == "__main__":
    # Small, forward-consistent shapes.
    B = 2
    in_chans = 4
    img_size = 16
    patch_size = 4
    embed_dim = 32

    mapper = {"chunk0": [0, 1, 2, 3]}
    cur_channels = jnp.asarray(mapper["chunk0"], dtype=jnp.int32)

    key = jax.random.PRNGKey(0)
    k_x, k_w, k_b, k_ce = jax.random.split(key, 4)

    x = jax.random.normal(k_x, (B, in_chans, img_size, img_size), jnp.float32)
    # Conv3d(1, D, kernel=(1, P, P)) weight / bias.
    proj_w = jax.random.normal(
        k_w, (embed_dim, 1, 1, patch_size, patch_size), jnp.float32) * 0.02
    proj_b = jax.random.normal(k_b, (embed_dim,), jnp.float32) * 0.02
    # nn.Embedding(in_chans, embed_dim) with trunc_normal std=0.02.
    channel_embed_w = jax.random.normal(
        k_ce, (in_chans, embed_dim), jnp.float32) * 0.02

    ref = _reference(x, proj_w, proj_b, channel_embed_w, cur_channels,
                     patch_size)

    # Exact-semantics path (input dtype, f32 here) through jit.
    fwd_f32 = jax.jit(functools.partial(patch_embed_per_channel,
                                        patch_size=patch_size))
    tokens, cin = fwd_f32(x, proj_w, proj_b, channel_embed_w, cur_channels)
    tokens = jax.block_until_ready(tokens)
    assert tokens.shape == (B, in_chans * (img_size // patch_size) ** 2,
                            embed_dim)
    assert int(cin) == in_chans
    assert jnp.allclose(tokens, ref, atol=1e-5, rtol=1e-5)

    # bf16 fast path (halves patch/output HBM traffic; bf16 MXU is full-rate on
    # all generations; callers expecting f32 tokens must cast explicitly).
    fwd_bf16 = jax.jit(functools.partial(patch_embed_per_channel,
                                         patch_size=patch_size,
                                         compute_dtype=jnp.bfloat16))
    tokens_bf16, _ = fwd_bf16(x, proj_w, proj_b, channel_embed_w, cur_channels)
    tokens_bf16 = jax.block_until_ready(tokens_bf16)
    assert jnp.allclose(tokens_bf16.astype(jnp.float32), ref,
                        atol=2e-2, rtol=2e-2)

    print("KERNEL_OK")
</pallas_src>

<mosaic_0001>
module attributes {stable_mosaic.version = 11 : i64} {
  func.func @_patch_embed_kernel(%arg0: i32, %arg1: i32, %arg2: i32, %arg3: memref<1x4x16x128xf32, #tpu.memory_space<vmem>>, %arg4: memref<128x32xf32, #tpu.memory_space<vmem>>, %arg5: memref<4x1x32xf32, #tpu.memory_space<vmem>>, %arg6: memref<1x4x16x32xf32, #tpu.memory_space<vmem>>) attributes {dimension_semantics = [#tpu.dimension_semantics<parallel>, #tpu.dimension_semantics<parallel>, #tpu.dimension_semantics<parallel>], iteration_bounds = array<i64: 2, 1, 1>, scalar_prefetch = 0 : i64, scratch_operands = 0 : i64, tpu.core_type = #tpu.core_type<tc>, window_params = [{transform_indices = @transform_0, window_bounds = array<i64: 1, 4, 16, 128>}, {pipeline_mode = #tpu.pipeline_mode<synchronous>, transform_indices = @transform_1, window_bounds = array<i64: 128, 32>}, {transform_indices = @transform_2, window_bounds = array<i64: 4, 1, 32>}, {transform_indices = @transform_3, window_bounds = array<i64: 1, 4, 16, 32>}]} {
    %c0 = arith.constant 0 : index
    %c0_0 = arith.constant 0 : index
    %c0_1 = arith.constant 0 : index
    %c0_2 = arith.constant 0 : index
    %0 = vector.load %arg3[%c0, %c0_0, %c0_1, %c0_2] : memref<1x4x16x128xf32, #tpu.memory_space<vmem>>, vector<1x1x16x128xf32>
    %1 = vector.shape_cast %0 : vector<1x1x16x128xf32> to vector<16x128xf32>
    %c0_3 = arith.constant 0 : index
    %c0_4 = arith.constant 0 : index
    %2 = vector.load %arg4[%c0_3, %c0_4] : memref<128x32xf32, #tpu.memory_space<vmem>>, vector<128x32xf32>
    %cst = arith.constant dense<0.000000e+00> : vector<16x32xf32>
    %3 = tpu.matmul %1, %2, %cst {dimension_numbers = #tpu.dot_dimension_numbers<[1], [0], [0], [1], [0, 0, 1, 1], [], []>} : vector<16x128xf32>, vector<128x32xf32>, vector<16x32xf32> -> vector<16x32xf32>
    %c0_5 = arith.constant 0 : index
    %c0_6 = arith.constant 0 : index
    %c0_7 = arith.constant 0 : index
    %4 = vector.load %arg5[%c0_5, %c0_6, %c0_7] : memref<4x1x32xf32, #tpu.memory_space<vmem>>, vector<1x1x32xf32>
    %5 = vector.shape_cast %4 : vector<1x1x32xf32> to vector<1x32xf32>
    %6 = vector.broadcast %5 : vector<1x32xf32> to vector<16x32xf32>
    %7 = arith.addf %3, %6 : vector<16x32xf32>
    %c0_8 = arith.constant 0 : index
    %c0_9 = arith.constant 0 : index
    %c0_10 = arith.constant 0 : index
    %c0_11 = arith.constant 0 : index
    %8 = vector.load %arg6[%c0_8, %c0_9, %c0_10, %c0_11] : memref<1x4x16x32xf32, #tpu.memory_space<vmem>>, vector<1x1x16x32xf32>
    %9 = vector.shape_cast %8 : vector<1x1x16x32xf32> to vector<16x32xf32>
    %10 = vector.shape_cast %7 : vector<16x32xf32> to vector<1x1x16x32xf32>
    tpu.vector_store %arg6[%c0_8, %c0_9, %c0_10, %c0_11], %10 {strides = array<i32>} : memref<1x4x16x32xf32, #tpu.memory_space<vmem>>, vector<1x1x16x32xf32>,
    %c0_12 = arith.constant 0 : index
    %c1 = arith.constant 1 : index
    %c0_13 = arith.constant 0 : index
    %c0_14 = arith.constant 0 : index
    %11 = vector.load %arg3[%c0_12, %c1, %c0_13, %c0_14] : memref<1x4x16x128xf32, #tpu.memory_space<vmem>>, vector<1x1x16x128xf32>
    %12 = vector.shape_cast %11 : vector<1x1x16x128xf32> to vector<16x128xf32>
    %c0_15 = arith.constant 0 : index
    %c0_16 = arith.constant 0 : index
    %13 = vector.load %arg4[%c0_15, %c0_16] : memref<128x32xf32, #tpu.memory_space<vmem>>, vector<128x32xf32>
    %cst_17 = arith.constant dense<0.000000e+00> : vector<16x32xf32>
    %14 = tpu.matmul %12, %13, %cst_17 {dimension_numbers = #tpu.dot_dimension_numbers<[1], [0], [0], [1], [0, 0, 1, 1], [], []>} : vector<16x128xf32>, vector<128x32xf32>, vector<16x32xf32> -> vector<16x32xf32>
    %c1_18 = arith.constant 1 : index
    %c0_19 = arith.constant 0 : index
    %c0_20 = arith.constant 0 : index
    %15 = vector.load %arg5[%c1_18, %c0_19, %c0_20] : memref<4x1x32xf32, #tpu.memory_space<vmem>>, vector<1x1x32xf32>
    %16 = vector.shape_cast %15 : vector<1x1x32xf32> to vector<1x32xf32>
    %17 = vector.broadcast %16 : vector<1x32xf32> to vector<16x32xf32>
    %18 = arith.addf %14, %17 : vector<16x32xf32>
    %c0_21 = arith.constant 0 : index
    %c1_22 = arith.constant 1 : index
    %c0_23 = arith.constant 0 : index
    %c0_24 = arith.constant 0 : index
    %19 = vector.load %arg6[%c0_21, %c1_22, %c0_23, %c0_24] : memref<1x4x16x32xf32, #tpu.memory_space<vmem>>, vector<1x1x16x32xf32>
    %20 = vector.shape_cast %19 : vector<1x1x16x32xf32> to vector<16x32xf32>
    %21 = vector.shape_cast %18 : vector<16x32xf32> to vector<1x1x16x32xf32>
    tpu.vector_store %arg6[%c0_21, %c1_22, %c0_23, %c0_24], %21 {strides = array<i32>} : memref<1x4x16x32xf32, #tpu.memory_space<vmem>>, vector<1x1x16x32xf32>,
    %c0_25 = arith.constant 0 : index
    %c2 = arith.constant 2 : index
    %c0_26 = arith.constant 0 : index
    %c0_27 = arith.constant 0 : index
    %22 = vector.load %arg3[%c0_25, %c2, %c0_26, %c0_27] : memref<1x4x16x128xf32, #tpu.memory_space<vmem>>, vector<1x1x16x128xf32>
    %23 = vector.shape_cast %22 : vector<1x1x16x128xf32> to vector<16x128xf32>
    %c0_28 = arith.constant 0 : index
    %c0_29 = arith.constant 0 : index
    %24 = vector.load %arg4[%c0_28, %c0_29] : memref<128x32xf32, #tpu.memory_space<vmem>>, vector<128x32xf32>
    %cst_30 = arith.constant dense<0.000000e+00> : vector<16x32xf32>
    %25 = tpu.matmul %23, %24, %cst_30 {dimension_numbers = #tpu.dot_dimension_numbers<[1], [0], [0], [1], [0, 0, 1, 1], [], []>} : vector<16x128xf32>, vector<128x32xf32>, vector<16x32xf32> -> vector<16x32xf32>
    %c2_31 = arith.constant 2 : index
    %c0_32 = arith.constant 0 : index
    %c0_33 = arith.constant 0 : index
    %26 = vector.load %arg5[%c2_31, %c0_32, %c0_33] : memref<4x1x32xf32, #tpu.memory_space<vmem>>, vector<1x1x32xf32>
    %27 = vector.shape_cast %26 : vector<1x1x32xf32> to vector<1x32xf32>
    %28 = vector.broadcast %27 : vector<1x32xf32> to vector<16x32xf32>
    %29 = arith.addf %25, %28 : vector<16x32xf32>
    %c0_34 = arith.constant 0 : index
    %c2_35 = arith.constant 2 : index
    %c0_36 = arith.constant 0 : index
    %c0_37 = arith.constant 0 : index
    %30 = vector.load %arg6[%c0_34, %c2_35, %c0_36, %c0_37] : memref<1x4x16x32xf32, #tpu.memory_space<vmem>>, vector<1x1x16x32xf32>
    %31 = vector.shape_cast %30 : vector<1x1x16x32xf32> to vector<16x32xf32>
    %32 = vector.shape_cast %29 : vector<16x32xf32> to vector<1x1x16x32xf32>
    tpu.vector_store %arg6[%c0_34, %c2_35, %c0_36, %c0_37], %32 {strides = array<i32>} : memref<1x4x16x32xf32, #tpu.memory_space<vmem>>, vector<1x1x16x32xf32>,
    %c0_38 = arith.constant 0 : index
    %c3 = arith.constant 3 : index
    %c0_39 = arith.constant 0 : index
    %c0_40 = arith.constant 0 : index
    %33 = vector.load %arg3[%c0_38, %c3, %c0_39, %c0_40] : memref<1x4x16x128xf32, #tpu.memory_space<vmem>>, vector<1x1x16x128xf32>
    %34 = vector.shape_cast %33 : vector<1x1x16x128xf32> to vector<16x128xf32>
    %c0_41 = arith.constant 0 : index
    %c0_42 = arith.constant 0 : index
    %35 = vector.load %arg4[%c0_41, %c0_42] : memref<128x32xf32, #tpu.memory_space<vmem>>, vector<128x32xf32>
    %cst_43 = arith.constant dense<0.000000e+00> : vector<16x32xf32>
    %36 = tpu.matmul %34, %35, %cst_43 {dimension_numbers = #tpu.dot_dimension_numbers<[1], [0], [0], [1], [0, 0, 1, 1], [], []>} : vector<16x128xf32>, vector<128x32xf32>, vector<16x32xf32> -> vector<16x32xf32>
    %c3_44 = arith.constant 3 : index
    %c0_45 = arith.constant 0 : index
    %c0_46 = arith.constant 0 : index
    %37 = vector.load %arg5[%c3_44, %c0_45, %c0_46] : memref<4x1x32xf32, #tpu.memory_space<vmem>>, vector<1x1x32xf32>
    %38 = vector.shape_cast %37 : vector<1x1x32xf32> to vector<1x32xf32>
    %39 = vector.broadcast %38 : vector<1x32xf32> to vector<16x32xf32>
    %40 = arith.addf %36, %39 : vector<16x32xf32>
    %c0_47 = arith.constant 0 : index
    %c3_48 = arith.constant 3 : index
    %c0_49 = arith.constant 0 : index
    %c0_50 = arith.constant 0 : index
    %41 = vector.load %arg6[%c0_47, %c3_48, %c0_49, %c0_50] : memref<1x4x16x32xf32, #tpu.memory_space<vmem>>, vector<1x1x16x32xf32>
    %42 = vector.shape_cast %41 : vector<1x1x16x32xf32> to vector<16x32xf32>
    %43 = vector.shape_cast %40 : vector<16x32xf32> to vector<1x1x16x32xf32>
    tpu.vector_store %arg6[%c0_47, %c3_48, %c0_49, %c0_50], %43 {strides = array<i32>} : memref<1x4x16x32xf32, #tpu.memory_space<vmem>>, vector<1x1x16x32xf32>,
    return
  }
  func.func @transform_0(%arg0: i32, %arg1: i32, %arg2: i32) -> (i32, i32, i32, i32) {
    %c0_i32 = arith.constant 0 : i32
    %c0_i32_0 = arith.constant 0 : i32
    return %arg0, %arg1, %arg2, %c0_i32 : i32, i32, i32, i32
  }
  func.func @transform_1(%arg0: i32, %arg1: i32, %arg2: i32) -> (i32, i32) {
    %c0_i32 = arith.constant 0 : i32
    %c0_i32_0 = arith.constant 0 : i32
    %c0_i32_1 = arith.constant 0 : i32
    return %c0_i32, %c0_i32_0 : i32, i32
  }
  func.func @transform_2(%arg0: i32, %arg1: i32, %arg2: i32) -> (i32, i32, i32) {
    %c0_i32 = arith.constant 0 : i32
    %c0_i32_0 = arith.constant 0 : i32
    %c0_i32_1 = arith.constant 0 : i32
    return %arg1, %c0_i32, %c0_i32_0 : i32, i32, i32
  }
  func.func @transform_3(%arg0: i32, %arg1: i32, %arg2: i32) -> (i32, i32, i32, i32) {
    %c0_i32 = arith.constant 0 : i32
    %c0_i32_0 = arith.constant 0 : i32
    return %arg0, %arg1, %arg2, %c0_i32 : i32, i32, i32, i32
  }
}

</mosaic_0001>

<llo_original>
// kernel: patch_embed_per_channel.2
$region0: #{patch_embed_per_channel.2}
  #allocation0 [shape = 'u32[]', space=smem, size = 0x4, offset = 0x4, fixed_abs, tag = 'smem constant byte address 0x4 - core index']
  #allocation1 [shape = 'u32[144,128]{1,0:T(1,128)}', space=vmem, size = 0x12000, scoped, tag = 'internal scratch']
  #allocation2 [shape = 'u32[2048]{0}', space=vmem, size = 0x2000, scoped, tag = 'scoped memory for patch_embed_per_channel.2']
  #allocation3 [shape = 'u32[2048]{0}', space=vmem, size = 0x2000, scoped, tag = 'scoped memory for patch_embed_per_channel.2']
  #allocation4 [shape = 'u32[2048]{0}', space=vmem, size = 0x2000, scoped, tag = 'scoped memory for patch_embed_per_channel.2']
  #allocation5 [shape = 'u32[2048]{0}', space=vmem, size = 0x2000, scoped, tag = 'scoped memory for patch_embed_per_channel.2']
  #allocation6 [shape = 'u32[2048]{0}', space=vmem, size = 0x2000, scoped, tag = 'scoped memory for patch_embed_per_channel.2']
  %s0 = inlined_call_operand.vmem [shape: f32[128,32], index: 0, kind: input, shape index: {}]
  %s1 = inlined_call_operand.vmem [shape: f32[4,1,32], index: 1, kind: input, shape index: {}]
  %s2 = inlined_call_operand.vmem [shape: f32[2,4,16,16], index: 2, kind: input, shape index: {}]
  %s3 = inlined_call_operand.<no memory space> [shape: f32[], index: 3, kind: input, shape index: {}]
  %s4 = inlined_call_operand.vmem [shape: f32[2,4,16,32], index: 4, kind: output, shape index: {}]
  %s5 = sld [smem:[#allocation0]]
  $region45: #{patch_embed_per_channel.2} parent=0
    _
  %s7 = ssub.s32 1, %s5
  %s8 = scalar_select 0, %s7, %s5
  %v9 = vstv %s3
  loop: start=0, step=1, limit=4
  $region2: #{patch_embed_per_channel.2} parent=0 // loop_pre_header
    _
  $region3: #{patch_embed_per_channel.2} parent=0 // loop_header
    %s11 = sphi 0, %s15
    %p12 = scmp.ge.s32.totalorder %s11, 4
    %s18 = sphi 0, %s37
    %s19 = sphi 0, %s33
    %s20 = sphi 0, %s29
    %s21 = sphi 0, %s18
    %s22 = sphi 0, %s19
    %s23 = sphi 0, %s20
    %s24 = sphi 0, %s21
    %s25 = sphi 0, %s22
    %s26 = sphi 0, %s23
    %s44 = sphi 0, %s46
    %s47 = sphi 0, %s44
    %s48 = sphi 0, %s47
    %s64 = sphi 0, %s48
    %s68 = sphi 0, %s68
    %s70 = sphi 0, %s68
    %s71 = sphi 0, %s70
    %s85 = sphi 0, %s71
    %s91 = sphi 0, %s93
    %s94 = sphi 0, %s91
    %s95 = sphi 0, %s94
    %s111 = sphi 0, %s95
    %s121 = sphi 0, %s123
    %s124 = sphi 0, %s121
    %s125 = sphi 0, %s124
    %s141 = sphi 0, %s125
  $region4: #{patch_embed_per_channel.2} parent=0 // loop_header_branch
    %14 = sbr.rel (%p12) target = $region8
  $region5: #{patch_embed_per_channel.2} parent=0 // loop_body
    %s16 = ssub.s32 %s11, 1
    %s17 = ssub.s32 %s11, 2
    %s27 = sadd.s32 1, %s20
    %p28 = scmp.ge.s32.totalorder %s27, 1
    %s29 = scalar_select %p28, 0, %s27
    %s30 = sadd.s32 1, %s19
    %s31 = scalar_select %p28, %s30, %s19
    %p32 = scmp.ge.s32.totalorder %s31, 1
    %s33 = scalar_select %p32, 0, %s31
    %s34 = sadd.s32 1, %s18
    %s35 = scalar_select %p32, %s34, %s18
    %p36 = scmp.ge.s32.totalorder %s35, 2
    %s37 = scalar_select %p36, 0, %s35
    %s38 = ssub.s32 %s18, %s37
    %s39 = ssub.s32 %s19, %s33
    %s40 = sor.u32 %s38, %s39
    %s41 = ssub.s32 %s20, %s29
    %s42 = sor.u32 %s40, %s41
    %p43 = scmp.eq.s32.totalorder %s42, 0
    %s45 = sadd.s32 %s44, 1
    %s46 = scalar_select %p43, %s44, %s45
    %p49 = pneg %p43
    %p50 = scmp.eq.s32.totalorder %s11, 1
    %p51 = por %p49, %p50
    %p52 = scmp.ne.s32.totalorder %s44, %s47
    %p53 = scmp.eq.s32.totalorder %s11, 0
    %p54 = por %p52, %p53
    %p55 = scmp.ne.s32.totalorder %s44, %s47
    %p56 = scmp.eq.s32.totalorder %s16, 1
    %p57 = por %p55, %p56
    %p58 = scmp.ne.s32.totalorder %s47, %s48
    %p59 = scmp.eq.s32.totalorder %s16, 0
    %p60 = por %p58, %p59
    %p61 = scmp.ne.s32.totalorder %s47, %s48
    %p62 = scmp.eq.s32.totalorder %s17, 1
    %p63 = por %p61, %p62
    %p65 = scmp.ne.s32.totalorder %s48, %s64
    %p66 = scmp.eq.s32.totalorder %s17, 0
    %p67 = por %p65, %p66
    %s69 = sadd.s32 %s68, 1
    %p72 = scmp.eq.s32.totalorder %s11, 1
    %p73 = scmp.ne.s32.totalorder %s68, %s70
    %p74 = scmp.eq.s32.totalorder %s11, 0
    %p75 = por %p73, %p74
    %p76 = scmp.ne.s32.totalorder %s68, %s70
    %p77 = scmp.eq.s32.totalorder %s16, 1
    %p78 = por %p76, %p77
    %p79 = scmp.ne.s32.totalorder %s70, %s71
    %p80 = scmp.eq.s32.totalorder %s16, 0
    %p81 = por %p79, %p80
    %p82 = scmp.ne.s32.totalorder %s70, %s71
    %p83 = scmp.eq.s32.totalorder %s17, 1
    %p84 = por %p82, %p83
    %p86 = scmp.ne.s32.totalorder %s71, %s85
    %p87 = scmp.eq.s32.totalorder %s17, 0
    %p88 = por %p86, %p87
    %s89 = ssub.s32 %s19, %s33
    %p90 = scmp.eq.s32.totalorder %s89, 0
    %s92 = sadd.s32 %s91, 1
    %s93 = scalar_select %p90, %s91, %s92
    %p96 = pneg %p90
    %p97 = scmp.eq.s32.totalorder %s11, 1
    %p98 = por %p96, %p97
    %p99 = scmp.ne.s32.totalorder %s91, %s94
    %p100 = scmp.eq.s32.totalorder %s11, 0
    %p101 = por %p99, %p100
    %p102 = scmp.ne.s32.totalorder %s91, %s94
    %p103 = scmp.eq.s32.totalorder %s16, 1
    %p104 = por %p102, %p103
    %p105 = scmp.ne.s32.totalorder %s94, %s95
    %p106 = scmp.eq.s32.totalorder %s16, 0
    %p107 = por %p105, %p106
    %p108 = scmp.ne.s32.totalorder %s94, %s95
    %p109 = scmp.eq.s32.totalorder %s17, 1
    %p110 = por %p108, %p109
    %p112 = scmp.ne.s32.totalorder %s95, %s111
    %p113 = scmp.eq.s32.totalorder %s17, 0
    %p114 = por %p112, %p113
    %s115 = ssub.s32 %s18, %s37
    %s116 = ssub.s32 %s19, %s33
    %s117 = sor.u32 %s115, %s116
    %s118 = ssub.s32 %s20, %s29
    %s119 = sor.u32 %s117, %s118
    %p120 = scmp.eq.s32.totalorder %s119, 0
    %s122 = sadd.s32 %s121, 1
    %s123 = scalar_select %p120, %s121, %s122
    %p126 = pneg %p120
    %p127 = scmp.eq.s32.totalorder %s11, 1
    %p128 = por %p126, %p127
    %p129 = scmp.ne.s32.totalorder %s121, %s124
    %p130 = scmp.eq.s32.totalorder %s11, 0
    %p131 = por %p129, %p130
    %p132 = scmp.ne.s32.totalorder %s121, %s124
    %p133 = scmp.eq.s32.totalorder %s16, 1
    %p134 = por %p132, %p133
    %p135 = scmp.ne.s32.totalorder %s124, %s125
    %p136 = scmp.eq.s32.totalorder %s16, 0
    %p137 = por %p135, %p136
    %p138 = scmp.ne.s32.totalorder %s124, %s125
    %p139 = scmp.eq.s32.totalorder %s17, 1
    %p140 = por %p138, %p139
    %p142 = scmp.ne.s32.totalorder %s125, %s141
    %p143 = scmp.eq.s32.totalorder %s17, 0
    %p144 = por %p142, %p143
    %p145 = scmp.le.s32.totalorder 1, %s11
    %p146 = scmp.lt.s32.totalorder %s11, 3
    %p147 = pnand %p145, %p146
    %p148 = pneg %p147
    // Predicated region
    $region9: #{patch_embed_per_channel.2} parent=5 // pred_check
      _
    $region10: #{patch_embed_per_channel.2} parent=5 // pred_check_branch
      %150 = sbr.rel (%p147) target = $region12
    $region11: #{patch_embed_per_channel.2} parent=5 // pred_region
      %s151 = ssub.s32 %s11, 1
      // Predicated region
      $region13: #{patch_embed_per_channel.2} parent=11 // pred_check
        %p152 = pneg %p81
      $region14: #{patch_embed_per_channel.2} parent=11 // pred_check_branch
        %154 = sbr.rel (%p152) target = $region16
      $region15: #{patch_embed_per_channel.2} parent=11 // pred_region
        _
      $region16: #{patch_embed_per_channel.2} parent=11 // pred_fallthru
        _
      // Predicated region
      $region17: #{patch_embed_per_channel.2} parent=11 // pred_check
        %p155 = pneg %p107
      $region18: #{patch_embed_per_channel.2} parent=11 // pred_check_branch
        %157 = sbr.rel (%p155) target = $region20
      $region19: #{patch_embed_per_channel.2} parent=11 // pred_region
        %s158 = smul.u32 4, %s22
        %p159 = scmp.lt.s32.totalorder %s158, 3
        %s160 = scalar_select %p159, %s158, 3
        %s161 = scalar_lea.vmem %s1, %s160
        %s162 = smul.u32 4, %s22
      $region20: #{patch_embed_per_channel.2} parent=11 // pred_fallthru
        _
    $region12: #{patch_embed_per_channel.2} parent=5 // pred_fallthru
      _
    %p163 = scmp.lt.s32.totalorder %s11, 2
    // Predicated region
    $region21: #{patch_embed_per_channel.2} parent=5 // pred_check
      %p164 = pneg %p163
    $region22: #{patch_embed_per_channel.2} parent=5 // pred_check_branch
      %166 = sbr.rel (%p164) target = $region24
    $region23: #{patch_embed_per_channel.2} parent=5 // pred_region
      // Predicated region
      $region25: #{patch_embed_per_channel.2} parent=23 // pred_check
        %p167 = pneg %p54
      $region26: #{patch_embed_per_channel.2} parent=23 // pred_check_branch
        %169 = sbr.rel (%p167) target = $region28
      $region27: #{patch_embed_per_channel.2} parent=23 // pred_region
        %s170 = smul.u32 4, %s19
        %s171 = smul.u32 2, %s20
        %p172 = scmp.lt.s32.totalorder %s18, 1
        %s173 = scalar_select %p172, %s18, 1
        %p174 = scmp.lt.s32.totalorder %s170, 3
        %s175 = scalar_select %p174, %s170, 3
        %p176 = scmp.lt.s32.totalorder %s171, 1
        %s177 = scalar_select %p176, %s171, 1
        %s178 = smul.addr %s175, 2
        %s179 = sadd.s32 %s177, %s178
        %s180 = smul.addr %s173, 8
        %s181 = sadd.s32 %s179, %s180
        %s182 = smul.addr %s181, 8
        %s183 = scalar_lea.vmem %s2, %s182
        %s184 = smul.u32 4, %s19
        %s185 = smul.u32 2, %s20
      $region28: #{patch_embed_per_channel.2} parent=23 // pred_fallthru
        _
    $region24: #{patch_embed_per_channel.2} parent=5 // pred_fallthru
      _
    %p186 = scmp.le.s32.totalorder 1, %s11
    %p187 = scmp.lt.s32.totalorder %s11, 3
    %p188 = pnand %p186, %p187
    %p189 = pneg %p188
    // Predicated region
    $region29: #{patch_embed_per_channel.2} parent=5 // pred_check
      _
    $region30: #{patch_embed_per_channel.2} parent=5 // pred_check_branch
      %191 = sbr.rel (%p188) target = $region32
    $region31: #{patch_embed_per_channel.2} parent=5 // pred_region
      #allocation7 [shape = 'u8[32768]{0}', space=vmem, size = 0x8000, dematerialized = true, scoped, tag = 'FusionAdapter Buffer %fusion.1 = f32[2,4,16,128]{3,2,1,0:T(8,128)} fusion(%param_2.1, %param_3), kind=kLoop, calls=%fused_computation.3.clone, metadata={op_name="jit(patch_embed_per_channel)/jit(_pad)/pad" stack_frame_id=10}']
      %s192 = ssub.s32 %s11, 1
      %s193 = smul.u32 4, %s22
      %s194 = smul.u32 2, %s23
      %p195 = scmp.lt.s32.totalorder %s21, 1
      %s196 = scalar_select %p195, %s21, 1
      %p197 = scmp.lt.s32.totalorder %s193, 3
      %s198 = scalar_select %p197, %s193, 3
      %p199 = scmp.lt.s32.totalorder %s194, 1
      %s200 = scalar_select %p199, %s194, 1
      %s201 = smul.addr %s198, 2
      %s202 = sadd.s32 %s200, %s201
      %s203 = smul.addr %s196, 8
      %s204 = sadd.s32 %s202, %s203
      %s205 = smul.addr %s204, 8
      %s206 = scalar_lea.vmem %s2, %s205
      %p207 = pneg %p60
      %p208 = pneg %p57
      %p209 = pneg %p81
      %p210 = pneg %p78
      %s211 = smul.u32 4, %s22
      %p212 = scmp.lt.s32.totalorder %s211, 3
      %s213 = scalar_select %p212, %s211, 3
      %s214 = scalar_lea.vmem %s1, %s213
      %p215 = pneg %p107
      %p216 = pneg %p104
      %p217 = pneg %p137
      %p218 = pneg %p134
      %s219 = smul.u32 4, %s22
      %s220 = smul.u32 2, %s23
      %p221 = scmp.lt.s32.totalorder %s21, 1
      %s222 = scalar_select %p221, %s21, 1
      %p223 = scmp.lt.s32.totalorder %s219, 3
      %s224 = scalar_select %p223, %s219, 3
      %p225 = scmp.lt.s32.totalorder %s220, 1
      %s226 = scalar_select %p225, %s220, 1
      %s227 = smul.addr %s224, 2
      %s228 = sadd.s32 %s226, %s227
      %s229 = smul.addr %s222, 8
      %s230 = sadd.s32 %s228, %s229
      %s231 = smul.addr %s230, 8
      %s232 = scalar_lea.vmem %s4, %s231
      %s233 = smul.u32 4, %s22
      %s234 = smul.u32 2, %s23
      %p235 = scmp.lt.s32.totalorder %s21, 1
      %s236 = scalar_select %p235, %s21, 1
      %p237 = scmp.lt.s32.totalorder %s233, 3
      %s238 = scalar_select %p237, %s233, 3
      %p239 = scmp.lt.s32.totalorder %s234, 1
      %s240 = scalar_select %p239, %s234, 1
      %s241 = smul.addr %s238, 2
      %s242 = sadd.s32 %s240, %s241
      %s243 = smul.addr %s236, 8
      %s244 = sadd.s32 %s242, %s243
      %s245 = smul.addr %s244, 8
      %s246 = scalar_lea.vmem %s2, %s245
      %s247 = smul.u32 4, %s22
      %s248 = smul.u32 2, %s23
      %s249 = smul.u32 4, %s22
      %p250 = scmp.lt.s32.totalorder %s249, 3
      %s251 = scalar_select %p250, %s249, 3
      %s252 = scalar_lea.vmem %s1, %s251
      %s253 = smul.u32 4, %s22
      %s254 = smul.u32 4, %s22
      %s255 = smul.u32 2, %s23
      %p256 = scmp.lt.s32.totalorder %s21, 1
      %s257 = scalar_select %p256, %s21, 1
      %p258 = scmp.lt.s32.totalorder %s254, 3
      %s259 = scalar_select %p258, %s254, 3
      %p260 = scmp.lt.s32.totalorder %s255, 1
      %s261 = scalar_select %p260, %s255, 1
      %s262 = smul.addr %s259, 2
      %s263 = sadd.s32 %s261, %s262
      %s264 = smul.addr %s257, 8
      %s265 = sadd.s32 %s263, %s264
      %s266 = smul.addr %s265, 8
      %s267 = scalar_lea.vmem %s4, %s266
      %s268 = smul.u32 4, %s22
      %s269 = smul.u32 2, %s23
      %v270 = vld [vmem:[%s246] sm:$0xff]
      %v271 = vlaneseq
      %v272 = vand.u32 %v271, 127
      %vm274 = vcmp.lt.s32.totalorder %v272, 16
      %v275 = vsel %vm274, %v270, %v9
      %s277 = ssub.s32 256, 1
      %278 = vst [vmem:[#allocation7] sm:%s277] %v275
      %s279 = scalar_lea.vmem %s246, 8
      %v280 = vld [vmem:[%s279] sm:$0xff]
      %v281 = vlaneseq
      %v282 = vand.u32 %v281, 127
      %vm284 = vcmp.lt.s32.totalorder %v282, 16
      %v285 = vsel %vm284, %v280, %v9
      %s286 = scalar_lea.vmem [#allocation7], 8
      %s288 = ssub.s32 256, 1
      %289 = vst [vmem:[%s286] sm:%s288] %v285
      %s290 = scalar_lea.vmem %s246, 16
      %v291 = vld [vmem:[%s290] sm:$0xff]
      %v292 = vlaneseq
      %v293 = vand.u32 %v292, 127
      %vm295 = vcmp.lt.s32.totalorder %v293, 16
      %v296 = vsel %vm295, %v291, %v9
      %s297 = scalar_lea.vmem [#allocation7], 16
      %s299 = ssub.s32 256, 1
      %300 = vst [vmem:[%s297] sm:%s299] %v296
      %s301 = scalar_lea.vmem %s246, 24
      %v302 = vld [vmem:[%s301] sm:$0xff]
      %v303 = vlaneseq
      %v304 = vand.u32 %v303, 127
      %vm306 = vcmp.lt.s32.totalorder %v304, 16
      %v307 = vsel %vm306, %v302, %v9
      %s308 = scalar_lea.vmem [#allocation7], 24
      %s310 = ssub.s32 256, 1
      %311 = vst [vmem:[%s308] sm:%s310] %v307
      %s312 = scalar_lea.vmem %s246, 32
      %v313 = vld [vmem:[%s312] sm:$0xff]
      %v314 = vlaneseq
      %v315 = vand.u32 %v314, 127
      %vm317 = vcmp.lt.s32.totalorder %v315, 16
      %v318 = vsel %vm317, %v313, %v9
      %s319 = scalar_lea.vmem [#allocation7], 32
      %s321 = ssub.s32 256, 1
      %322 = vst [vmem:[%s319] sm:%s321] %v318
      %s323 = scalar_lea.vmem %s246, 40
      %v324 = vld [vmem:[%s323] sm:$0xff]
      %v325 = vlaneseq
      %v326 = vand.u32 %v325, 127
      %vm328 = vcmp.lt.s32.totalorder %v326, 16
      %v329 = vsel %vm328, %v324, %v9
      %s330 = scalar_lea.vmem [#allocation7], 40
      %s332 = ssub.s32 256, 1
      %333 = vst [vmem:[%s330] sm:%s332] %v329
      %s334 = scalar_lea.vmem %s246, 48
      %v335 = vld [vmem:[%s334] sm:$0xff]
      %v336 = vlaneseq
      %v337 = vand.u32 %v336, 127
      %vm339 = vcmp.lt.s32.totalorder %v337, 16
      %v340 = vsel %vm339, %v335, %v9
      %s341 = scalar_lea.vmem [#allocation7], 48
      %s343 = ssub.s32 256, 1
      %344 = vst [vmem:[%s341] sm:%s343] %v340
      %s345 = scalar_lea.vmem %s246, 56
      %v346 = vld [vmem:[%s345] sm:$0xff]
      %v347 = vlaneseq
      %v348 = vand.u32 %v347, 127
      %vm350 = vcmp.lt.s32.totalorder %v348, 16
      %v351 = vsel %vm350, %v346, %v9
      %s352 = scalar_lea.vmem [#allocation7], 56
      %s354 = ssub.s32 256, 1
      %355 = vst [vmem:[%s352] sm:%s354] %v351
      %v356 = vld [vmem:[#allocation7] sm:$0xff]
      %v357 = vld [vmem:[#allocation7 + $0x8] sm:$0xff]
      %v358 = vld [vmem:[%s0] sm:$0xff]
      %v359 = vld [vmem:[%s0 + $0x8] sm:$0xff]
      %v360 = vld [vmem:[%s0 + $0x10] sm:$0xff]
      %v361 = vld [vmem:[%s0 + $0x18] sm:$0xff]
      %v362 = vld [vmem:[%s0 + $0x20] sm:$0xff]
      %v363 = vld [vmem:[%s0 + $0x28] sm:$0xff]
      %v364 = vld [vmem:[%s0 + $0x30] sm:$0xff]
      %v365 = vld [vmem:[%s0 + $0x38] sm:$0xff]
      %v366 = vld [vmem:[%s0 + $0x40] sm:$0xff]
      %v367 = vld [vmem:[%s0 + $0x48] sm:$0xff]
      %v368 = vld [vmem:[%s0 + $0x50] sm:$0xff]
      %v369 = vld [vmem:[%s0 + $0x58] sm:$0xff]
      %v370 = vld [vmem:[%s0 + $0x60] sm:$0xff]
      %v371 = vld [vmem:[%s0 + $0x68] sm:$0xff]
      %v372 = vld [vmem:[%s0 + $0x70] sm:$0xff]
      %v373 = vld [vmem:[%s0 + $0x78] sm:$0xff]
      %v374 = vld [vmem:[%s252] sm:$0x1]
      %v376 = vlaneseq
      %v377 = vshrl.u32 %v376, 7
      %v378 = vsub.s32 0, %v377
      %v379 = vrot.slane %v374, %v378
      %381 = vmatprep.subr.mxu0 0.0
      %382 = vmatpush1.msra.mxu0 %v373
      %383 = vmatprep.subr.mxu0 0.0
      %384 = vmatpush1.msra.mxu0 %v372
      %385 = vmatprep.subr.mxu0 0.0
      %386 = vmatpush1.msra.mxu0 %v371
      %387 = vmatprep.subr.mxu0 0.0
      %388 = vmatpush1.msra.mxu0 %v370
      %389 = vmatprep.subr.mxu0 0.0
      %390 = vmatpush1.msra.mxu0 %v369
      %391 = vmatprep.subr.mxu0 0.0
      %392 = vmatpush1.msra.mxu0 %v368
      %393 = vmatprep.subr.mxu0 0.0
      %394 = vmatpush1.msra.mxu0 %v367
      %395 = vmatprep.subr.mxu0 0.0
      %396 = vmatpush1.msra.mxu0 %v366
      %397 = vmatprep.subr.mxu0 0.0
      %398 = vmatpush1.msra.mxu0 %v365
      %399 = vmatprep.subr.mxu0 0.0
      %400 = vmatpush1.msra.mxu0 %v364
      %401 = vmatprep.subr.mxu0 0.0
      %402 = vmatpush1.msra.mxu0 %v363
      %403 = vmatprep.subr.mxu0 0.0
      %404 = vmatpush1.msra.mxu0 %v362
      %405 = vmatprep.subr.mxu0 0.0
      %406 = vmatpush1.msra.mxu0 %v361
      %407 = vmatprep.subr.mxu0 0.0
      %408 = vmatpush1.msra.mxu0 %v360
      %409 = vmatprep.subr.mxu0 0.0
      %410 = vmatpush1.msra.mxu0 %v359
      %411 = vmatprep.subr.mxu0 0.0
      %412 = vmatpush1.msra.mxu0 %v358
      %413 = vmatprep.subr.mxu0 0.0
      %414 = vmatpush2.msra.mxu0 0.0
      %415 = vmatprep.subr.mxu0 0.0
      %416 = vmatpush2.msra.mxu0 0.0
      %417 = vmatprep.subr.mxu0 0.0
      %418 = vmatpush2.msra.mxu0 0.0
      %419 = vmatprep.subr.mxu0 0.0
      %420 = vmatpush2.msra.mxu0 0.0
      %421 = vmatprep.subr.mxu0 0.0
      %422 = vmatpush2.msra.mxu0 0.0
      %423 = vmatprep.subr.mxu0 0.0
      %424 = vmatpush2.msra.mxu0 0.0
      %425 = vmatprep.subr.mxu0 0.0
      %426 = vmatpush2.msra.mxu0 0.0
      %427 = vmatprep.subr.mxu0 0.0
      %428 = vmatpush2.msra.mxu0 0.0
      %429 = vmatprep.subr.mxu0 0.0
      %430 = vmatpush2.msra.mxu0 0.0
      %431 = vmatprep.subr.mxu0 0.0
      %432 = vmatpush2.msra.mxu0 0.0
      %433 = vmatprep.subr.mxu0 0.0
      %434 = vmatpush2.msra.mxu0 0.0
      %435 = vmatprep.subr.mxu0 0.0
      %436 = vmatpush2.msra.mxu0 0.0
      %437 = vmatprep.subr.mxu0 0.0
      %438 = vmatpush2.msra.mxu0 0.0
      %439 = vmatprep.subr.mxu0 0.0
      %440 = vmatpush2.msra.mxu0 0.0
      %441 = vmatprep.subr.mxu0 0.0
      %442 = vmatpush2.msra.mxu0 0.0
      %443 = vmatprep.subr.mxu0 0.0
      %444 = vmatpush2.msra.mxu0 0.0
      %445 = vmatprep.mubr.f32.mxu0 0.0
      %446 = vmatmul.mubr.f32.gmra.mxu0 %v356
      %v447 = vpop.f32.mrf.mxu0
      %v448 = vadd.f32 %v379, %v447
      %v449 = vpop.f32.mrf.mxu0
      %450 = vmatprep.mubr.f32.mxu0 0.0
      %451 = vmatmul.mubr.f32.gmra.mxu0 %v357
      %v452 = vpop.f32.mrf.mxu0
      %v453 = vadd.f32 %v379, %v452
      %v454 = vpop.f32.mrf.mxu0
      %455 = vdwg.mxu0
      %vm456 = vcmask 261120
      %457 = vst.msk [vmem:[%s267] sm:$0xff] %vm456, %v448
      %458 = vst.msk [vmem:[%s267 + $0x8] sm:$0xff] %vm456, %v453
      %s459 = scalar_lea.vmem [#allocation7], 16
      %v460 = vld [vmem:[%s459] sm:$0xff]
      %v461 = vld [vmem:[%s459 + $0x8] sm:$0xff]
      %v462 = vld [vmem:[%s0] sm:$0xff]
      %v463 = vld [vmem:[%s0 + $0x8] sm:$0xff]
      %v464 = vld [vmem:[%s0 + $0x10] sm:$0xff]
      %v465 = vld [vmem:[%s0 + $0x18] sm:$0xff]
      %v466 = vld [vmem:[%s0 + $0x20] sm:$0xff]
      %v467 = vld [vmem:[%s0 + $0x28] sm:$0xff]
      %v468 = vld [vmem:[%s0 + $0x30] sm:$0xff]
      %v469 = vld [vmem:[%s0 + $0x38] sm:$0xff]
      %v470 = vld [vmem:[%s0 + $0x40] sm:$0xff]
      %v471 = vld [vmem:[%s0 + $0x48] sm:$0xff]
      %v472 = vld [vmem:[%s0 + $0x50] sm:$0xff]
      %v473 = vld [vmem:[%s0 + $0x58] sm:$0xff]
      %v474 = vld [vmem:[%s0 + $0x60] sm:$0xff]
      %v475 = vld [vmem:[%s0 + $0x68] sm:$0xff]
      %v476 = vld [vmem:[%s0 + $0x70] sm:$0xff]
      %v477 = vld [vmem:[%s0 + $0x78] sm:$0xff]
      %s478 = scalar_lea.vmem %s252, 1
      %v479 = vld [vmem:[%s478] sm:$0x1]
      %v481 = vlaneseq
      %v482 = vshrl.u32 %v481, 7
      %v483 = vsub.s32 0, %v482
      %v484 = vrot.slane %v479, %v483
      %486 = vmatprep.subr.mxu0 0.0
      %487 = vmatpush1.msra.mxu0 %v477
      %488 = vmatprep.subr.mxu0 0.0
      %489 = vmatpush1.msra.mxu0 %v476
      %490 = vmatprep.subr.mxu0 0.0
      %491 = vmatpush1.msra.mxu0 %v475
      %492 = vmatprep.subr.mxu0 0.0
      %493 = vmatpush1.msra.mxu0 %v474
      %494 = vmatprep.subr.mxu0 0.0
      %495 = vmatpush1.msra.mxu0 %v473
      %496 = vmatprep.subr.mxu0 0.0
      %497 = vmatpush1.msra.mxu0 %v472
      %498 = vmatprep.subr.mxu0 0.0
      %499 = vmatpush1.msra.mxu0 %v471
      %500 = vmatprep.subr.mxu0 0.0
      %501 = vmatpush1.msra.mxu0 %v470
      %502 = vmatprep.subr.mxu0 0.0
      %503 = vmatpush1.msra.mxu0 %v469
      %504 = vmatprep.subr.mxu0 0.0
      %505 = vmatpush1.msra.mxu0 %v468
      %506 = vmatprep.subr.mxu0 0.0
      %507 = vmatpush1.msra.mxu0 %v467
      %508 = vmatprep.subr.mxu0 0.0
      %509 = vmatpush1.msra.mxu0 %v466
      %510 = vmatprep.subr.mxu0 0.0
      %511 = vmatpush1.msra.mxu0 %v465
      %512 = vmatprep.subr.mxu0 0.0
      %513 = vmatpush1.msra.mxu0 %v464
      %514 = vmatprep.subr.mxu0 0.0
      %515 = vmatpush1.msra.mxu0 %v463
      %516 = vmatprep.subr.mxu0 0.0
      %517 = vmatpush1.msra.mxu0 %v462
      %518 = vmatprep.subr.mxu0 0.0
      %519 = vmatpush2.msra.mxu0 0.0
      %520 = vmatprep.subr.mxu0 0.0
      %521 = vmatpush2.msra.mxu0 0.0
      %522 = vmatprep.subr.mxu0 0.0
      %523 = vmatpush2.msra.mxu0 0.0
      %524 = vmatprep.subr.mxu0 0.0
      %525 = vmatpush2.msra.mxu0 0.0
      %526 = vmatprep.subr.mxu0 0.0
      %527 = vmatpush2.msra.mxu0 0.0
      %528 = vmatprep.subr.mxu0 0.0
      %529 = vmatpush2.msra.mxu0 0.0
      %530 = vmatprep.subr.mxu0 0.0
      %531 = vmatpush2.msra.mxu0 0.0
      %532 = vmatprep.subr.mxu0 0.0
      %533 = vmatpush2.msra.mxu0 0.0
      %534 = vmatprep.subr.mxu0 0.0
      %535 = vmatpush2.msra.mxu0 0.0
      %536 = vmatprep.subr.mxu0 0.0
      %537 = vmatpush2.msra.mxu0 0.0
      %538 = vmatprep.subr.mxu0 0.0
      %539 = vmatpush2.msra.mxu0 0.0
      %540 = vmatprep.subr.mxu0 0.0
      %541 = vmatpush2.msra.mxu0 0.0
      %542 = vmatprep.subr.mxu0 0.0
      %543 = vmatpush2.msra.mxu0 0.0
      %544 = vmatprep.subr.mxu0 0.0
      %545 = vmatpush2.msra.mxu0 0.0
      %546 = vmatprep.subr.mxu0 0.0
      %547 = vmatpush2.msra.mxu0 0.0
      %548 = vmatprep.subr.mxu0 0.0
      %549 = vmatpush2.msra.mxu0 0.0
      %550 = vmatprep.mubr.f32.mxu0 0.0
      %551 = vmatmul.mubr.f32.gmra.mxu0 %v460
      %v552 = vpop.f32.mrf.mxu0
      %v553 = vadd.f32 %v484, %v552
      %v554 = vpop.f32.mrf.mxu0
      %555 = vmatprep.mubr.f32.mxu0 0.0
      %556 = vmatmul.mubr.f32.gmra.mxu0 %v461
      %v557 = vpop.f32.mrf.mxu0
      %v558 = vadd.f32 %v484, %v557
      %v559 = vpop.f32.mrf.mxu0
      %560 = vdwg.mxu0
      %s561 = scalar_lea.vmem %s267, 16
      %562 = vst.msk [vmem:[%s561] sm:$0xff] %vm456, %v553
      %563 = vst.msk [vmem:[%s561 + $0x8] sm:$0xff] %vm456, %v558
      %s564 = scalar_lea.vmem [#allocation7], 32
      %v565 = vld [vmem:[%s564] sm:$0xff]
      %v566 = vld [vmem:[%s564 + $0x8] sm:$0xff]
      %v567 = vld [vmem:[%s0] sm:$0xff]
      %v568 = vld [vmem:[%s0 + $0x8] sm:$0xff]
      %v569 = vld [vmem:[%s0 + $0x10] sm:$0xff]
      %v570 = vld [vmem:[%s0 + $0x18] sm:$0xff]
      %v571 = vld [vmem:[%s0 + $0x20] sm:$0xff]
      %v572 = vld [vmem:[%s0 + $0x28] sm:$0xff]
      %v573 = vld [vmem:[%s0 + $0x30] sm:$0xff]
      %v574 = vld [vmem:[%s0 + $0x38] sm:$0xff]
      %v575 = vld [vmem:[%s0 + $0x40] sm:$0xff]
      %v576 = vld [vmem:[%s0 + $0x48] sm:$0xff]
      %v577 = vld [vmem:[%s0 + $0x50] sm:$0xff]
      %v578 = vld [vmem:[%s0 + $0x58] sm:$0xff]
      %v579 = vld [vmem:[%s0 + $0x60] sm:$0xff]
      %v580 = vld [vmem:[%s0 + $0x68] sm:$0xff]
      %v581 = vld [vmem:[%s0 + $0x70] sm:$0xff]
      %v582 = vld [vmem:[%s0 + $0x78] sm:$0xff]
      %s583 = scalar_lea.vmem %s252, 2
      %v584 = vld [vmem:[%s583] sm:$0x1]
      %v586 = vlaneseq
      %v587 = vshrl.u32 %v586, 7
      %v588 = vsub.s32 0, %v587
      %v589 = vrot.slane %v584, %v588
      %591 = vmatprep.subr.mxu0 0.0
      %592 = vmatpush1.msra.mxu0 %v582
      %593 = vmatprep.subr.mxu0 0.0
      %594 = vmatpush1.msra.mxu0 %v581
      %595 = vmatprep.subr.mxu0 0.0
      %596 = vmatpush1.msra.mxu0 %v580
      %597 = vmatprep.subr.mxu0 0.0
      %598 = vmatpush1.msra.mxu0 %v579
      %599 = vmatprep.subr.mxu0 0.0
      %600 = vmatpush1.msra.mxu0 %v578
      %601 = vmatprep.subr.mxu0 0.0
      %602 = vmatpush1.msra.mxu0 %v577
      %603 = vmatprep.subr.mxu0 0.0
      %604 = vmatpush1.msra.mxu0 %v576
      %605 = vmatprep.subr.mxu0 0.0
      %606 = vmatpush1.msra.mxu0 %v575
      %607 = vmatprep.subr.mxu0 0.0
      %608 = vmatpush1.msra.mxu0 %v574
      %609 = vmatprep.subr.mxu0 0.0
      %610 = vmatpush1.msra.mxu0 %v573
      %611 = vmatprep.subr.mxu0 0.0
      %612 = vmatpush1.msra.mxu0 %v572
      %613 = vmatprep.subr.mxu0 0.0
      %614 = vmatpush1.msra.mxu0 %v571
      %615 = vmatprep.subr.mxu0 0.0
      %616 = vmatpush1.msra.mxu0 %v570
      %617 = vmatprep.subr.mxu0 0.0
      %618 = vmatpush1.msra.mxu0 %v569
      %619 = vmatprep.subr.mxu0 0.0
      %620 = vmatpush1.msra.mxu0 %v568
      %621 = vmatprep.subr.mxu0 0.0
      %622 = vmatpush1.msra.mxu0 %v567
      %623 = vmatprep.subr.mxu0 0.0
      %624 = vmatpush2.msra.mxu0 0.0
      %625 = vmatprep.subr.mxu0 0.0
      %626 = vmatpush2.msra.mxu0 0.0
      %627 = vmatprep.subr.mxu0 0.0
      %628 = vmatpush2.msra.mxu0 0.0
      %629 = vmatprep.subr.mxu0 0.0
      %630 = vmatpush2.msra.mxu0 0.0
      %631 = vmatprep.subr.mxu0 0.0
      %632 = vmatpush2.msra.mxu0 0.0
      %633 = vmatprep.subr.mxu0 0.0
      %634 = vmatpush2.msra.mxu0 0.0
      %635 = vmatprep.subr.mxu0 0.0
      %636 = vmatpush2.msra.mxu0 0.0
      %637 = vmatprep.subr.mxu0 0.0
      %638 = vmatpush2.msra.mxu0 0.0
      %639 = vmatprep.subr.mxu0 0.0
      %640 = vmatpush2.msra.mxu0 0.0
      %641 = vmatprep.subr.mxu0 0.0
      %642 = vmatpush2.msra.mxu0 0.0
      %643 = vmatprep.subr.mxu0 0.0
      %644 = vmatpush2.msra.mxu0 0.0
      %645 = vmatprep.subr.mxu0 0.0
      %646 = vmatpush2.msra.mxu0 0.0
      %647 = vmatprep.subr.mxu0 0.0
      %648 = vmatpush2.msra.mxu0 0.0
      %649 = vmatprep.subr.mxu0 0.0
      %650 = vmatpush2.msra.mxu0 0.0
      %651 = vmatprep.subr.mxu0 0.0
      %652 = vmatpush2.msra.mxu0 0.0
      %653 = vmatprep.subr.mxu0 0.0
      %654 = vmatpush2.msra.mxu0 0.0
      %655 = vmatprep.mubr.f32.mxu0 0.0
      %656 = vmatmul.mubr.f32.gmra.mxu0 %v565
      %v657 = vpop.f32.mrf.mxu0
      %v658 = vadd.f32 %v589, %v657
      %v659 = vpop.f32.mrf.mxu0
      %660 = vmatprep.mubr.f32.mxu0 0.0
      %661 = vmatmul.mubr.f32.gmra.mxu0 %v566
      %v662 = vpop.f32.mrf.mxu0
      %v663 = vadd.f32 %v589, %v662
      %v664 = vpop.f32.mrf.mxu0
      %665 = vdwg.mxu0
      %s666 = scalar_lea.vmem %s267, 32
      %667 = vst.msk [vmem:[%s666] sm:$0xff] %vm456, %v658
      %668 = vst.msk [vmem:[%s666 + $0x8] sm:$0xff] %vm456, %v663
      %s669 = scalar_lea.vmem [#allocation7], 48
      %v670 = vld [vmem:[%s669] sm:$0xff]
      %v671 = vld [vmem:[%s669 + $0x8] sm:$0xff]
      %v672 = vld [vmem:[%s0] sm:$0xff]
      %v673 = vld [vmem:[%s0 + $0x8] sm:$0xff]
      %v674 = vld [vmem:[%s0 + $0x10] sm:$0xff]
      %v675 = vld [vmem:[%s0 + $0x18] sm:$0xff]
      %v676 = vld [vmem:[%s0 + $0x20] sm:$0xff]
      %v677 = vld [vmem:[%s0 + $0x28] sm:$0xff]
      %v678 = vld [vmem:[%s0 + $0x30] sm:$0xff]
      %v679 = vld [vmem:[%s0 + $0x38] sm:$0xff]
      %v680 = vld [vmem:[%s0 + $0x40] sm:$0xff]
      %v681 = vld [vmem:[%s0 + $0x48] sm:$0xff]
      %v682 = vld [vmem:[%s0 + $0x50] sm:$0xff]
      %v683 = vld [vmem:[%s0 + $0x58] sm:$0xff]
      %v684 = vld [vmem:[%s0 + $0x60] sm:$0xff]
      %v685 = vld [vmem:[%s0 + $0x68] sm:$0xff]
      %v686 = vld [vmem:[%s0 + $0x70] sm:$0xff]
      %v687 = vld [vmem:[%s0 + $0x78] sm:$0xff]
      %s688 = scalar_lea.vmem %s252, 3
      %v689 = vld [vmem:[%s688] sm:$0x1]
      %v691 = vlaneseq
      %v692 = vshrl.u32 %v691, 7
      %v693 = vsub.s32 0, %v692
      %v694 = vrot.slane %v689, %v693
      %696 = vmatprep.subr.mxu0 0.0
      %697 = vmatpush1.msra.mxu0 %v687
      %698 = vmatprep.subr.mxu0 0.0
      %699 = vmatpush1.msra.mxu0 %v686
      %700 = vmatprep.subr.mxu0 0.0
      %701 = vmatpush1.msra.mxu0 %v685
      %702 = vmatprep.subr.mxu0 0.0
      %703 = vmatpush1.msra.mxu0 %v684
      %704 = vmatprep.subr.mxu0 0.0
      %705 = vmatpush1.msra.mxu0 %v683
      %706 = vmatprep.subr.mxu0 0.0
      %707 = vmatpush1.msra.mxu0 %v682
      %708 = vmatprep.subr.mxu0 0.0
      %709 = vmatpush1.msra.mxu0 %v681
      %710 = vmatprep.subr.mxu0 0.0
      %711 = vmatpush1.msra.mxu0 %v680
      %712 = vmatprep.subr.mxu0 0.0
      %713 = vmatpush1.msra.mxu0 %v679
      %714 = vmatprep.subr.mxu0 0.0
      %715 = vmatpush1.msra.mxu0 %v678
      %716 = vmatprep.subr.mxu0 0.0
      %717 = vmatpush1.msra.mxu0 %v677
      %718 = vmatprep.subr.mxu0 0.0
      %719 = vmatpush1.msra.mxu0 %v676
      %720 = vmatprep.subr.mxu0 0.0
      %721 = vmatpush1.msra.mxu0 %v675
      %722 = vmatprep.subr.mxu0 0.0
      %723 = vmatpush1.msra.mxu0 %v674
      %724 = vmatprep.subr.mxu0 0.0
      %725 = vmatpush1.msra.mxu0 %v673
      %726 = vmatprep.subr.mxu0 0.0
      %727 = vmatpush1.msra.mxu0 %v672
      %728 = vmatprep.subr.mxu0 0.0
      %729 = vmatpush2.msra.mxu0 0.0
      %730 = vmatprep.subr.mxu0 0.0
      %731 = vmatpush2.msra.mxu0 0.0
      %732 = vmatprep.subr.mxu0 0.0
      %733 = vmatpush2.msra.mxu0 0.0
      %734 = vmatprep.subr.mxu0 0.0
      %735 = vmatpush2.msra.mxu0 0.0
      %736 = vmatprep.subr.mxu0 0.0
      %737 = vmatpush2.msra.mxu0 0.0
      %738 = vmatprep.subr.mxu0 0.0
      %739 = vmatpush2.msra.mxu0 0.0
      %740 = vmatprep.subr.mxu0 0.0
      %741 = vmatpush2.msra.mxu0 0.0
      %742 = vmatprep.subr.mxu0 0.0
      %743 = vmatpush2.msra.mxu0 0.0
      %744 = vmatprep.subr.mxu0 0.0
      %745 = vmatpush2.msra.mxu0 0.0
      %746 = vmatprep.subr.mxu0 0.0
      %747 = vmatpush2.msra.mxu0 0.0
      %748 = vmatprep.subr.mxu0 0.0
      %749 = vmatpush2.msra.mxu0 0.0
      %750 = vmatprep.subr.mxu0 0.0
      %751 = vmatpush2.msra.mxu0 0.0
      %752 = vmatprep.subr.mxu0 0.0
      %753 = vmatpush2.msra.mxu0 0.0
      %754 = vmatprep.subr.mxu0 0.0
      %755 = vmatpush2.msra.mxu0 0.0
      %756 = vmatprep.subr.mxu0 0.0
      %757 = vmatpush2.msra.mxu0 0.0
      %758 = vmatprep.subr.mxu0 0.0
      %759 = vmatpush2.msra.mxu0 0.0
      %760 = vmatprep.mubr.f32.mxu0 0.0
      %761 = vmatmul.mubr.f32.gmra.mxu0 %v670
      %v762 = vpop.f32.mrf.mxu0
      %v763 = vadd.f32 %v694, %v762
      %v764 = vpop.f32.mrf.mxu0
      %765 = vmatprep.mubr.f32.mxu0 0.0
      %766 = vmatmul.mubr.f32.gmra.mxu0 %v671
      %v767 = vpop.f32.mrf.mxu0
      %v768 = vadd.f32 %v694, %v767
      %v769 = vpop.f32.mrf.mxu0
      %770 = vdwg.mxu0
      %s771 = scalar_lea.vmem %s267, 48
      %772 = vst.msk [vmem:[%s771] sm:$0xff] %vm456, %v763
      %773 = vst.msk [vmem:[%s771 + $0x8] sm:$0xff] %vm456, %v768
      %s774 = smul.u32 4, %s22
      %s775 = smul.u32 2, %s23
      %p776 = scmp.lt.s32.totalorder %s21, 1
      %s777 = scalar_select %p776, %s21, 1
      %p778 = scmp.lt.s32.totalorder %s774, 3
      %s779 = scalar_select %p778, %s774, 3
      %p780 = scmp.lt.s32.totalorder %s775, 1
      %s781 = scalar_select %p780, %s775, 1
      %s782 = smul.addr %s779, 2
      %s783 = sadd.s32 %s781, %s782
      %s784 = smul.addr %s777, 8
      %s785 = sadd.s32 %s783, %s784
      %s786 = smul.addr %s785, 8
      %s787 = scalar_lea.vmem %s4, %s786
      // Predicated region
      $region33: #{patch_embed_per_channel.2} parent=31 // pred_check
        %p788 = pneg %p134
      $region34: #{patch_embed_per_channel.2} parent=31 // pred_check_branch
        %790 = sbr.rel (%p788) target = $region36
      $region35: #{patch_embed_per_channel.2} parent=31 // pred_region
        %s791 = smul.u32 4, %s22
        %s792 = smul.u32 2, %s23
      $region36: #{patch_embed_per_channel.2} parent=31 // pred_fallthru
        _
    $region32: #{patch_embed_per_channel.2} parent=5 // pred_fallthru
      _
    %p793 = scmp.le.s32.totalorder 2, %s11
    // Predicated region
    $region37: #{patch_embed_per_channel.2} parent=5 // pred_check
      %p794 = pneg %p793
    $region38: #{patch_embed_per_channel.2} parent=5 // pred_check_branch
      %796 = sbr.rel (%p794) target = $region40
    $region39: #{patch_embed_per_channel.2} parent=5 // pred_region
      %s797 = ssub.s32 %s11, 2
      // Predicated region
      $region41: #{patch_embed_per_channel.2} parent=39 // pred_check
        %p798 = pneg %p140
      $region42: #{patch_embed_per_channel.2} parent=39 // pred_check_branch
        %800 = sbr.rel (%p798) target = $region44
      $region43: #{patch_embed_per_channel.2} parent=39 // pred_region
        %s801 = smul.u32 4, %s25
        %s802 = smul.u32 2, %s26
        %p803 = scmp.lt.s32.totalorder %s24, 1
        %s804 = scalar_select %p803, %s24, 1
        %p805 = scmp.lt.s32.totalorder %s801, 3
        %s806 = scalar_select %p805, %s801, 3
        %p807 = scmp.lt.s32.totalorder %s802, 1
        %s808 = scalar_select %p807, %s802, 1
        %s809 = smul.addr %s806, 2
        %s810 = sadd.s32 %s808, %s809
        %s811 = smul.addr %s804, 8
        %s812 = sadd.s32 %s810, %s811
        %s813 = smul.addr %s812, 8
        %s814 = scalar_lea.vmem %s4, %s813
      $region44: #{patch_embed_per_channel.2} parent=39 // pred_fallthru
        _
    $region40: #{patch_embed_per_channel.2} parent=5 // pred_fallthru
      _
  $region6: #{patch_embed_per_channel.2} parent=0 // loop_footer
    %s15 = sadd.s32 1, %s11
  $region7: #{patch_embed_per_channel.2} parent=0 // loop_footer_branch
    %10 = sbr.rel target = $region3
  $region8: #{patch_embed_per_channel.2} parent=0 // loop_exit
    _

</llo_original>
